<compile_context>
chip_gen: v7x
topology: tpu7x:2x2x1
jax: 0.10.0
libtpu: 0.0.40
codegen_flags: <defaults>
</compile_context>

<pallas_src>
import functools

import numpy as np
import jax
import jax.numpy as jnp
from jax.experimental import pallas as pl
from jax.experimental.pallas import tpu as pltpu


# ----------------------------------------------------------------------------
# Fused kernel: QKV projection -> 2x2 pool -> attention -> out-proj + BN + res
# ----------------------------------------------------------------------------
def _nonlocal_fused_kernel(x_ref, wqkv_ref, bqkv_ref, wout_ref, bout_ref, z_ref,
                           *, IC, M):
    # x_ref   : (1, C, N)  channel-first, window-ordered (N = 4*M)
    # wqkv_ref: (3*IC, C)  rows = [theta; phi; g] weights (transposed 1x1 convs)
    # bqkv_ref: (3*IC, 1)
    # wout_ref: (C, IC)    W-conv weight with eval-BN scale folded in
    # bout_ref: (C, 1)     W-conv bias  with eval-BN scale/shift folded in
    # z_ref   : (1, C, N)
    x = x_ref[0]                                                     # (C, N)

    # Fused theta/phi/g projection: (3IC, C) @ (C, N) -> (3IC, N)
    qkv = jax.lax.dot_general(
        wqkv_ref[...], x, (((1,), (0,)), ((), ())),
        preferred_element_type=jnp.float32) + bqkv_ref[...]
    theta = qkv[0:IC]                                                # (IC, N)
    phi = qkv[IC:2 * IC]                                             # (IC, N)
    g = qkv[2 * IC:3 * IC]                                           # (IC, N)

    # sub_sample=True: 2x2 max pool after the phi/g projections.
    # Window-ordered lanes (n = k*M + m) -> max of 4 contiguous lane slices.
    phi_p = jnp.maximum(jnp.maximum(phi[:, 0:M], phi[:, M:2 * M]),
                        jnp.maximum(phi[:, 2 * M:3 * M], phi[:, 3 * M:4 * M]))
    g_p = jnp.maximum(jnp.maximum(g[:, 0:M], g[:, M:2 * M]),
                      jnp.maximum(g[:, 2 * M:3 * M], g[:, 3 * M:4 * M]))

    # Attention scores: f[m, n] = sum_ic phi_p[ic, m] * theta[ic, n]
    # (keys on sublanes, queries lane-dense; no explicit transpose materialized)
    f = jax.lax.dot_general(phi_p, theta, (((0,), (0,)), ((), ())),
                            preferred_element_type=jnp.float32)      # (M, N)

    # Softmax over keys (axis 0), numerically stable, normalization deferred.
    fmax = jnp.max(f, axis=0, keepdims=True)                         # (1, N)
    e = jnp.exp(f - fmax)                                            # (M, N)
    s = jnp.sum(e, axis=0, keepdims=True)                            # (1, N)

    # y[ic, n] = (1/s[n]) * sum_m g_p[ic, m] * e[m, n]
    y = jax.lax.dot_general(g_p, e, (((1,), (0,)), ((), ())),
                            preferred_element_type=jnp.float32)      # (IC, N)
    y = y * (1.0 / s)   # deferred softmax normalization (IC*N instead of M*N)

    # W 1x1 conv with folded eval-mode BatchNorm + residual.
    wy = jax.lax.dot_general(wout_ref[...], y, (((1,), (0,)), ((), ())),
                             preferred_element_type=jnp.float32) + bout_ref[...]
    z_ref[0] = wy + x


# ----------------------------------------------------------------------------
# Full forward (NCHW in, NCHW out) — matches NonLocalBlockND.forward semantics
# ----------------------------------------------------------------------------
def nonlocal_block_forward(x_nchw, params):
    B, C, H, W = x_nchw.shape
    IC = params["theta_w"].shape[1]
    # TODO(synk): PyTorch MaxPool2d floors odd H/W; only even spatial dims here.
    assert H % 2 == 0 and W % 2 == 0, "sub_sample 2x2 pool needs even H, W"
    Hh, Wh = H // 2, W // 2
    M = Hh * Wh
    N = H * W

    # ---- layout glue (plain JAX): channel-first, window-ordered spatial axis.
    # n = k*M + m, k = ph*2 + pw (pixel inside the 2x2 window), m = i*Wh + j.
    x_win = (x_nchw.reshape(B, C, Hh, 2, Wh, 2)
             .transpose(0, 1, 3, 5, 2, 4)
             .reshape(B, C, N))

    # ---- fold parameters on the host (once).
    w_qkv = jnp.concatenate(
        [params["theta_w"].T, params["phi_w"].T, params["g_w"].T], axis=0)    # (3IC, C)
    b_qkv = jnp.concatenate(
        [params["theta_b"], params["phi_b"], params["g_b"]], axis=0
    ).reshape(3 * IC, 1)                                                      # (3IC, 1)
    eps = params["bn_eps"]
    scale = params["bn_gamma"] / jnp.sqrt(params["bn_var"] + eps)             # (C,)
    shift = params["bn_beta"] - params["bn_mean"] * scale                     # (C,)
    w_out = params["w_w"].T * scale[:, None]                                  # (C, IC)
    b_out = (params["w_b"] * scale + shift).reshape(C, 1)                     # (C, 1)

    kernel = functools.partial(_nonlocal_fused_kernel, IC=IC, M=M)

    flops = 2 * B * N * IC * (4 * C + 2 * M)
    bytes_accessed = 4 * (2 * B * C * N + 3 * IC * C + 3 * IC + C * IC + C)

    z_win = pl.pallas_call(
        kernel,
        out_shape=jax.ShapeDtypeStruct((B, C, N), jnp.float32),
        grid=(B,),
        in_specs=[
            pl.BlockSpec((1, C, N), lambda b: (b, 0, 0)),
            pl.BlockSpec((3 * IC, C), lambda b: (0, 0)),
            pl.BlockSpec((3 * IC, 1), lambda b: (0, 0)),
            pl.BlockSpec((C, IC), lambda b: (0, 0)),
            pl.BlockSpec((C, 1), lambda b: (0, 0)),
        ],
        out_specs=pl.BlockSpec((1, C, N), lambda b: (b, 0, 0)),
        input_output_aliases={0: 0},  # residual written into x_win's buffer
        compiler_params=pltpu.CompilerParams(
            dimension_semantics=("parallel",),
            vmem_limit_bytes=32 * 1024 * 1024,
        ),
        cost_estimate=pl.CostEstimate(
            flops=flops, transcendentals=B * N * M,
            bytes_accessed=bytes_accessed),
    )(x_win, w_qkv, b_qkv, w_out, b_out)

    # ---- undo the window permutation, return NCHW.
    z = (z_win.reshape(B, C, 2, 2, Hh, Wh)
         .transpose(0, 1, 4, 2, 5, 3)
         .reshape(B, C, H, W))
    return z


# ----------------------------------------------------------------------------
# Pure-JAX reference (mirrors the PyTorch forward exactly) for verification
# ----------------------------------------------------------------------------
def reference_forward(x, params):
    B, C, H, W = x.shape
    IC = params["theta_w"].shape[1]

    def conv1x1(t, w, b):  # w stored (Cin, Cout); torch weight is (Cout, Cin, 1, 1)
        return jnp.einsum("bchw,cd->bdhw", t, w) + b.reshape(1, -1, 1, 1)

    def pool(t):
        b_, c_, h_, w_ = t.shape
        return t.reshape(b_, c_, h_ // 2, 2, w_ // 2, 2).max(axis=(3, 5))

    g_x = pool(conv1x1(x, params["g_w"], params["g_b"]))
    g_x = g_x.reshape(B, IC, -1).transpose(0, 2, 1)                      # (B, M, IC)
    theta_x = conv1x1(x, params["theta_w"], params["theta_b"])
    theta_x = theta_x.reshape(B, IC, -1).transpose(0, 2, 1)              # (B, N, IC)
    phi_x = pool(conv1x1(x, params["phi_w"], params["phi_b"]))
    phi_x = phi_x.reshape(B, IC, -1)                                     # (B, IC, M)

    f = jnp.einsum("bnc,bcm->bnm", theta_x, phi_x)
    p = jax.nn.softmax(f, axis=-1)
    y = jnp.einsum("bnm,bmc->bnc", p, g_x)                               # (B, N, IC)
    y = y.transpose(0, 2, 1).reshape(B, IC, H, W)

    wy = conv1x1(y, params["w_w"], params["w_b"])
    eps = params["bn_eps"]
    scale = (params["bn_gamma"] / jnp.sqrt(params["bn_var"] + eps)).reshape(1, -1, 1, 1)
    shift = (params["bn_beta"] - params["bn_mean"] *
             params["bn_gamma"] / jnp.sqrt(params["bn_var"] + eps)).reshape(1, -1, 1, 1)
    return wy * scale + shift + x


# ----------------------------------------------------------------------------
# Deterministic parameter construction (shapes per NonLocalBlockND.__init__)
# ----------------------------------------------------------------------------
def make_params(key, in_channels, nonzero_bn=False):
    inter = max(in_channels // 2, 1)
    ks = jax.random.split(key, 12)
    s = 0.1

    def conv(kw, kb, cin, cout):
        w = s * jax.random.normal(kw, (cin, cout), jnp.float32)
        b = s * jax.random.normal(kb, (cout,), jnp.float32)
        return w, b

    g_w, g_b = conv(ks[0], ks[1], in_channels, inter)
    theta_w, theta_b = conv(ks[2], ks[3], in_channels, inter)
    phi_w, phi_b = conv(ks[4], ks[5], in_channels, inter)
    w_w, w_b = conv(ks[6], ks[7], inter, in_channels)

    if nonzero_bn:
        # non-trivial eval-mode BN stats so the attention path is exercised
        bn_gamma = 1.0 + 0.1 * jax.random.normal(ks[8], (in_channels,), jnp.float32)
        bn_beta = 0.1 * jax.random.normal(ks[9], (in_channels,), jnp.float32)
        bn_mean = 0.1 * jax.random.normal(ks[10], (in_channels,), jnp.float32)
        bn_var = 0.5 + jax.random.uniform(ks[11], (in_channels,), jnp.float32)
    else:
        # module __init__: BN weight/bias constant-initialized to 0 (eval mode)
        bn_gamma = jnp.zeros((in_channels,), jnp.float32)
        bn_beta = jnp.zeros((in_channels,), jnp.float32)
        bn_mean = jnp.zeros((in_channels,), jnp.float32)
        bn_var = jnp.ones((in_channels,), jnp.float32)

    return {
        "g_w": g_w, "g_b": g_b,
        "theta_w": theta_w, "theta_b": theta_b,
        "phi_w": phi_w, "phi_b": phi_b,
        "w_w": w_w, "w_b": w_b,
        "bn_gamma": bn_gamma, "bn_beta": bn_beta,
        "bn_mean": bn_mean, "bn_var": bn_var,
        "bn_eps": 1e-5,
    }


if __name__ == "__main__":
    key = jax.random.PRNGKey(0)
    k_x, k_p = jax.random.split(key)

    B, C, H, W = 2, 8, 16, 16  # NCHW, like the PyTorch module
    x = jax.random.normal(k_x, (B, C, H, W), jnp.float32)

    fwd = jax.jit(nonlocal_block_forward)

    # 1) module-default init (BN gamma/beta = 0  ->  output == residual)
    params0 = make_params(k_p, C, nonzero_bn=False)
    z0 = jax.block_until_ready(fwd(x, params0))
    z0_ref = jax.block_until_ready(reference_forward(x, params0))
    np.testing.assert_allclose(np.asarray(z0), np.asarray(z0_ref),
                               rtol=1e-5, atol=1e-5)

    # 2) nonzero BN stats so projections / pooling / softmax / out-proj are
    #    actually verified (the default-init test alone is vacuous).
    params1 = make_params(k_p, C, nonzero_bn=True)
    z1 = jax.block_until_ready(fwd(x, params1))
    z1_ref = jax.block_until_ready(reference_forward(x, params1))
    np.testing.assert_allclose(np.asarray(z1), np.asarray(z1_ref),
                               rtol=1e-5, atol=1e-5)

    print("KERNEL_OK")
</pallas_src>

<mosaic_0001>
module attributes {stable_mosaic.version = 11 : i64} {
  func.func @_nonlocal_fused_kernel(%arg0: i32, %arg1: memref<1x8x256xf32, #tpu.memory_space<vmem>>, %arg2: memref<12x8xf32, #tpu.memory_space<vmem>>, %arg3: memref<12x1xf32, #tpu.memory_space<vmem>>, %arg4: memref<8x4xf32, #tpu.memory_space<vmem>>, %arg5: memref<8x1xf32, #tpu.memory_space<vmem>>, %arg6: memref<1x8x256xf32, #tpu.memory_space<vmem>>) attributes {dimension_semantics = [#tpu.dimension_semantics<parallel>], iteration_bounds = array<i64: 2>, scalar_prefetch = 0 : i64, scratch_operands = 0 : i64, tpu.core_type = #tpu.core_type<tc>, window_params = [{transform_indices = @transform_0, window_bounds = array<i64: 1, 8, 256>}, {pipeline_mode = #tpu.pipeline_mode<synchronous>, transform_indices = @transform_1, window_bounds = array<i64: 12, 8>}, {pipeline_mode = #tpu.pipeline_mode<synchronous>, transform_indices = @transform_2, window_bounds = array<i64: 12, 1>}, {pipeline_mode = #tpu.pipeline_mode<synchronous>, transform_indices = @transform_3, window_bounds = array<i64: 8, 4>}, {pipeline_mode = #tpu.pipeline_mode<synchronous>, transform_indices = @transform_4, window_bounds = array<i64: 8, 1>}, {transform_indices = @transform_5, window_bounds = array<i64: 1, 8, 256>}]} {
    %c0 = arith.constant 0 : index
    %c0_0 = arith.constant 0 : index
    %c0_1 = arith.constant 0 : index
    %0 = vector.load %arg1[%c0, %c0_0, %c0_1] : memref<1x8x256xf32, #tpu.memory_space<vmem>>, vector<1x8x256xf32>
    %1 = vector.shape_cast %0 : vector<1x8x256xf32> to vector<8x256xf32>
    %c0_2 = arith.constant 0 : index
    %c0_3 = arith.constant 0 : index
    %2 = vector.load %arg2[%c0_2, %c0_3] : memref<12x8xf32, #tpu.memory_space<vmem>>, vector<12x8xf32>
    %cst = arith.constant dense<0.000000e+00> : vector<12x256xf32>
    %3 = tpu.matmul %2, %1, %cst {dimension_numbers = #tpu.dot_dimension_numbers<[1], [0], [0], [1], [0, 0, 1, 1], [], []>} : vector<12x8xf32>, vector<8x256xf32>, vector<12x256xf32> -> vector<12x256xf32>
    %c0_4 = arith.constant 0 : index
    %c0_5 = arith.constant 0 : index
    %4 = vector.load %arg3[%c0_4, %c0_5] : memref<12x1xf32, #tpu.memory_space<vmem>>, vector<12x1xf32>
    %5 = vector.broadcast %4 : vector<12x1xf32> to vector<12x256xf32>
    %6 = arith.addf %3, %5 : vector<12x256xf32>
    %7 = vector.extract_strided_slice %6 {offsets = [0, 0], sizes = [4, 256], strides = [1, 1]} : vector<12x256xf32> to vector<4x256xf32>
    %8 = vector.extract_strided_slice %6 {offsets = [4, 0], sizes = [4, 256], strides = [1, 1]} : vector<12x256xf32> to vector<4x256xf32>
    %9 = vector.extract_strided_slice %6 {offsets = [8, 0], sizes = [4, 256], strides = [1, 1]} : vector<12x256xf32> to vector<4x256xf32>
    %10 = vector.extract_strided_slice %8 {offsets = [0, 0], sizes = [4, 64], strides = [1, 1]} : vector<4x256xf32> to vector<4x64xf32>
    %11 = vector.extract_strided_slice %8 {offsets = [0, 64], sizes = [4, 64], strides = [1, 1]} : vector<4x256xf32> to vector<4x64xf32>
    %12 = arith.maximumf %10, %11 : vector<4x64xf32>
    %13 = vector.extract_strided_slice %8 {offsets = [0, 128], sizes = [4, 64], strides = [1, 1]} : vector<4x256xf32> to vector<4x64xf32>
    %14 = vector.extract_strided_slice %8 {offsets = [0, 192], sizes = [4, 64], strides = [1, 1]} : vector<4x256xf32> to vector<4x64xf32>
    %15 = arith.maximumf %13, %14 : vector<4x64xf32>
    %16 = arith.maximumf %12, %15 : vector<4x64xf32>
    %17 = vector.extract_strided_slice %9 {offsets = [0, 0], sizes = [4, 64], strides = [1, 1]} : vector<4x256xf32> to vector<4x64xf32>
    %18 = vector.extract_strided_slice %9 {offsets = [0, 64], sizes = [4, 64], strides = [1, 1]} : vector<4x256xf32> to vector<4x64xf32>
    %19 = arith.maximumf %17, %18 : vector<4x64xf32>
    %20 = vector.extract_strided_slice %9 {offsets = [0, 128], sizes = [4, 64], strides = [1, 1]} : vector<4x256xf32> to vector<4x64xf32>
    %21 = vector.extract_strided_slice %9 {offsets = [0, 192], sizes = [4, 64], strides = [1, 1]} : vector<4x256xf32> to vector<4x64xf32>
    %22 = arith.maximumf %20, %21 : vector<4x64xf32>
    %23 = arith.maximumf %19, %22 : vector<4x64xf32>
    %cst_6 = arith.constant dense<0.000000e+00> : vector<64x256xf32>
    %24 = tpu.matmul %16, %7, %cst_6 {dimension_numbers = #tpu.dot_dimension_numbers<[0], [0], [1], [1], [0, 1, 1, 1], [], []>} : vector<4x64xf32>, vector<4x256xf32>, vector<64x256xf32> -> vector<64x256xf32>
    %cst_7 = arith.constant dense<0xFF800000> : vector<256xf32>
    %25 = vector.multi_reduction <maximumf>, %24, %cst_7 [0] : vector<64x256xf32> to vector<256xf32>
    %26 = vector.shape_cast %25 : vector<256xf32> to vector<1x256xf32>
    %27 = vector.broadcast %26 : vector<1x256xf32> to vector<64x256xf32>
    %28 = arith.subf %24, %27 : vector<64x256xf32>
    %29 = math.exp %28 : vector<64x256xf32>
    %cst_8 = arith.constant dense<0.000000e+00> : vector<256xf32>
    %30 = vector.multi_reduction <add>, %29, %cst_8 [0] : vector<64x256xf32> to vector<256xf32>
    %31 = vector.shape_cast %30 : vector<256xf32> to vector<1x256xf32>
    %cst_9 = arith.constant dense<0.000000e+00> : vector<4x256xf32>
    %32 = tpu.matmul %23, %29, %cst_9 {dimension_numbers = #tpu.dot_dimension_numbers<[1], [0], [0], [1], [0, 0, 1, 1], [], []>} : vector<4x64xf32>, vector<64x256xf32>, vector<4x256xf32> -> vector<4x256xf32>
    %cst_10 = arith.constant 1.000000e+00 : f32
    %33 = vector.broadcast %cst_10 : f32 to vector<1x256xf32>
    %34 = arith.divf %33, %31 : vector<1x256xf32>
    %35 = vector.broadcast %34 : vector<1x256xf32> to vector<4x256xf32>
    %36 = arith.mulf %32, %35 : vector<4x256xf32>
    %c0_11 = arith.constant 0 : index
    %c0_12 = arith.constant 0 : index
    %37 = vector.load %arg4[%c0_11, %c0_12] : memref<8x4xf32, #tpu.memory_space<vmem>>, vector<8x4xf32>
    %cst_13 = arith.constant dense<0.000000e+00> : vector<8x256xf32>
    %38 = tpu.matmul %37, %36, %cst_13 {dimension_numbers = #tpu.dot_dimension_numbers<[1], [0], [0], [1], [0, 0, 1, 1], [], []>} : vector<8x4xf32>, vector<4x256xf32>, vector<8x256xf32> -> vector<8x256xf32>
    %c0_14 = arith.constant 0 : index
    %c0_15 = arith.constant 0 : index
    %39 = vector.load %arg5[%c0_14, %c0_15] : memref<8x1xf32, #tpu.memory_space<vmem>>, vector<8x1xf32>
    %40 = vector.broadcast %39 : vector<8x1xf32> to vector<8x256xf32>
    %41 = arith.addf %38, %40 : vector<8x256xf32>
    %42 = arith.addf %41, %1 : vector<8x256xf32>
    %c0_16 = arith.constant 0 : index
    %c0_17 = arith.constant 0 : index
    %c0_18 = arith.constant 0 : index
    %43 = vector.load %arg6[%c0_16, %c0_17, %c0_18] : memref<1x8x256xf32, #tpu.memory_space<vmem>>, vector<1x8x256xf32>
    %44 = vector.shape_cast %43 : vector<1x8x256xf32> to vector<8x256xf32>
    %45 = vector.shape_cast %42 : vector<8x256xf32> to vector<1x8x256xf32>
    tpu.vector_store %arg6[%c0_16, %c0_17, %c0_18], %45 {strides = array<i32>} : memref<1x8x256xf32, #tpu.memory_space<vmem>>, vector<1x8x256xf32>,
    return
  }
  func.func @transform_0(%arg0: i32) -> (i32, i32, i32) {
    %c0_i32 = arith.constant 0 : i32
    %c0_i32_0 = arith.constant 0 : i32
    %c0_i32_1 = arith.constant 0 : i32
    return %arg0, %c0_i32, %c0_i32_0 : i32, i32, i32
  }
  func.func @transform_1(%arg0: i32) -> (i32, i32) {
    %c0_i32 = arith.constant 0 : i32
    %c0_i32_0 = arith.constant 0 : i32
    %c0_i32_1 = arith.constant 0 : i32
    return %c0_i32, %c0_i32_0 : i32, i32
  }
  func.func @transform_2(%arg0: i32) -> (i32, i32) {
    %c0_i32 = arith.constant 0 : i32
    %c0_i32_0 = arith.constant 0 : i32
    %c0_i32_1 = arith.constant 0 : i32
    return %c0_i32, %c0_i32_0 : i32, i32
  }
  func.func @transform_3(%arg0: i32) -> (i32, i32) {
    %c0_i32 = arith.constant 0 : i32
    %c0_i32_0 = arith.constant 0 : i32
    %c0_i32_1 = arith.constant 0 : i32
    return %c0_i32, %c0_i32_0 : i32, i32
  }
  func.func @transform_4(%arg0: i32) -> (i32, i32) {
    %c0_i32 = arith.constant 0 : i32
    %c0_i32_0 = arith.constant 0 : i32
    %c0_i32_1 = arith.constant 0 : i32
    return %c0_i32, %c0_i32_0 : i32, i32
  }
  func.func @transform_5(%arg0: i32) -> (i32, i32, i32) {
    %c0_i32 = arith.constant 0 : i32
    %c0_i32_0 = arith.constant 0 : i32
    %c0_i32_1 = arith.constant 0 : i32
    return %arg0, %c0_i32, %c0_i32_0 : i32, i32, i32
  }
}

</mosaic_0001>

<llo_original>
// kernel: nonlocal_block_forward.1
$region0: #{nonlocal_block_forward.1}
  #allocation0 [shape = 'u32[]', space=smem, size = 0x4, offset = 0x4, fixed_abs, tag = 'smem constant byte address 0x4 - core index']
  #allocation1 [shape = 'u32[144,128]{1,0:T(1,128)}', space=vmem, size = 0x12000, scoped, tag = 'internal scratch']
  %s0 = inlined_call_operand.vmem [shape: f32[2,8,256], index: 0, kind: input, shape index: {}, may-alias: {0,5}]
  %s1 = inlined_call_operand.vmem [shape: f32[12,8], index: 1, kind: input, shape index: {}]
  %s2 = inlined_call_operand.vmem [shape: f32[12,1], index: 2, kind: input, shape index: {}]
  %s3 = inlined_call_operand.vmem [shape: f32[8,4], index: 3, kind: input, shape index: {}]
  %s4 = inlined_call_operand.vmem [shape: f32[8,1], index: 4, kind: input, shape index: {}]
  %s5 = inlined_call_operand.vmem [shape: f32[2,8,256], index: 5, kind: output, shape index: {}, may-alias: {0,5}]
  %s6 = sld [smem:[#allocation0]]
  $region53: #{nonlocal_block_forward.1} parent=0
    _
  %s8 = ssub.s32 1, %s6
  %s9 = scalar_select 0, %s8, %s6
  loop: start=0, step=1, limit=4
  $region2: #{nonlocal_block_forward.1} parent=0 // loop_pre_header
    _
  $region3: #{nonlocal_block_forward.1} parent=0 // loop_header
    %s11 = sphi 0, %s15
    %p12 = scmp.ge.s32.totalorder %s11, 4
    %s21 = sphi 0, %s23
    %s24 = sphi 0, %s21
    %s25 = sphi 0, %s24
    %s41 = sphi 0, %s25
    %s45 = sphi 0, %s45
    %s47 = sphi 0, %s45
    %s48 = sphi 0, %s47
    %s62 = sphi 0, %s48
    %s66 = sphi 0, %s66
    %s68 = sphi 0, %s66
    %s69 = sphi 0, %s68
    %s83 = sphi 0, %s69
    %s87 = sphi 0, %s87
    %s89 = sphi 0, %s87
    %s90 = sphi 0, %s89
    %s104 = sphi 0, %s90
    %s108 = sphi 0, %s108
    %s110 = sphi 0, %s108
    %s111 = sphi 0, %s110
    %s125 = sphi 0, %s111
    %s131 = sphi 0, %s133
    %s134 = sphi 0, %s131
    %s135 = sphi 0, %s134
    %s151 = sphi 0, %s135
  $region4: #{nonlocal_block_forward.1} parent=0 // loop_header_branch
    %14 = sbr.rel (%p12) target = $region8
  $region5: #{nonlocal_block_forward.1} parent=0 // loop_body
    %s16 = ssub.s32 %s11, 1
    %s17 = ssub.s32 %s11, 2
    %s18 = sadd.s32 %s11, 1
    %s19 = ssub.s32 %s11, %s18
    %p20 = scmp.eq.s32.totalorder %s19, 0
    %s22 = sadd.s32 %s21, 1
    %s23 = scalar_select %p20, %s21, %s22
    %p26 = pneg %p20
    %p27 = scmp.eq.s32.totalorder %s11, 1
    %p28 = por %p26, %p27
    %p29 = scmp.ne.s32.totalorder %s21, %s24
    %p30 = scmp.eq.s32.totalorder %s11, 0
    %p31 = por %p29, %p30
    %p32 = scmp.ne.s32.totalorder %s21, %s24
    %p33 = scmp.eq.s32.totalorder %s16, 1
    %p34 = por %p32, %p33
    %p35 = scmp.ne.s32.totalorder %s24, %s25
    %p36 = scmp.eq.s32.totalorder %s16, 0
    %p37 = por %p35, %p36
    %p38 = scmp.ne.s32.totalorder %s24, %s25
    %p39 = scmp.eq.s32.totalorder %s17, 1
    %p40 = por %p38, %p39
    %p42 = scmp.ne.s32.totalorder %s25, %s41
    %p43 = scmp.eq.s32.totalorder %s17, 0
    %p44 = por %p42, %p43
    %s46 = sadd.s32 %s45, 1
    %p49 = scmp.eq.s32.totalorder %s11, 1
    %p50 = scmp.ne.s32.totalorder %s45, %s47
    %p51 = scmp.eq.s32.totalorder %s11, 0
    %p52 = por %p50, %p51
    %p53 = scmp.ne.s32.totalorder %s45, %s47
    %p54 = scmp.eq.s32.totalorder %s16, 1
    %p55 = por %p53, %p54
    %p56 = scmp.ne.s32.totalorder %s47, %s48
    %p57 = scmp.eq.s32.totalorder %s16, 0
    %p58 = por %p56, %p57
    %p59 = scmp.ne.s32.totalorder %s47, %s48
    %p60 = scmp.eq.s32.totalorder %s17, 1
    %p61 = por %p59, %p60
    %p63 = scmp.ne.s32.totalorder %s48, %s62
    %p64 = scmp.eq.s32.totalorder %s17, 0
    %p65 = por %p63, %p64
    %s67 = sadd.s32 %s66, 1
    %p70 = scmp.eq.s32.totalorder %s11, 1
    %p71 = scmp.ne.s32.totalorder %s66, %s68
    %p72 = scmp.eq.s32.totalorder %s11, 0
    %p73 = por %p71, %p72
    %p74 = scmp.ne.s32.totalorder %s66, %s68
    %p75 = scmp.eq.s32.totalorder %s16, 1
    %p76 = por %p74, %p75
    %p77 = scmp.ne.s32.totalorder %s68, %s69
    %p78 = scmp.eq.s32.totalorder %s16, 0
    %p79 = por %p77, %p78
    %p80 = scmp.ne.s32.totalorder %s68, %s69
    %p81 = scmp.eq.s32.totalorder %s17, 1
    %p82 = por %p80, %p81
    %p84 = scmp.ne.s32.totalorder %s69, %s83
    %p85 = scmp.eq.s32.totalorder %s17, 0
    %p86 = por %p84, %p85
    %s88 = sadd.s32 %s87, 1
    %p91 = scmp.eq.s32.totalorder %s11, 1
    %p92 = scmp.ne.s32.totalorder %s87, %s89
    %p93 = scmp.eq.s32.totalorder %s11, 0
    %p94 = por %p92, %p93
    %p95 = scmp.ne.s32.totalorder %s87, %s89
    %p96 = scmp.eq.s32.totalorder %s16, 1
    %p97 = por %p95, %p96
    %p98 = scmp.ne.s32.totalorder %s89, %s90
    %p99 = scmp.eq.s32.totalorder %s16, 0
    %p100 = por %p98, %p99
    %p101 = scmp.ne.s32.totalorder %s89, %s90
    %p102 = scmp.eq.s32.totalorder %s17, 1
    %p103 = por %p101, %p102
    %p105 = scmp.ne.s32.totalorder %s90, %s104
    %p106 = scmp.eq.s32.totalorder %s17, 0
    %p107 = por %p105, %p106
    %s109 = sadd.s32 %s108, 1
    %p112 = scmp.eq.s32.totalorder %s11, 1
    %p113 = scmp.ne.s32.totalorder %s108, %s110
    %p114 = scmp.eq.s32.totalorder %s11, 0
    %p115 = por %p113, %p114
    %p116 = scmp.ne.s32.totalorder %s108, %s110
    %p117 = scmp.eq.s32.totalorder %s16, 1
    %p118 = por %p116, %p117
    %p119 = scmp.ne.s32.totalorder %s110, %s111
    %p120 = scmp.eq.s32.totalorder %s16, 0
    %p121 = por %p119, %p120
    %p122 = scmp.ne.s32.totalorder %s110, %s111
    %p123 = scmp.eq.s32.totalorder %s17, 1
    %p124 = por %p122, %p123
    %p126 = scmp.ne.s32.totalorder %s111, %s125
    %p127 = scmp.eq.s32.totalorder %s17, 0
    %p128 = por %p126, %p127
    %s129 = ssub.s32 %s11, %s18
    %p130 = scmp.eq.s32.totalorder %s129, 0
    %s132 = sadd.s32 %s131, 1
    %s133 = scalar_select %p130, %s131, %s132
    %p136 = pneg %p130
    %p137 = scmp.eq.s32.totalorder %s11, 1
    %p138 = por %p136, %p137
    %p139 = scmp.ne.s32.totalorder %s131, %s134
    %p140 = scmp.eq.s32.totalorder %s11, 0
    %p141 = por %p139, %p140
    %p142 = scmp.ne.s32.totalorder %s131, %s134
    %p143 = scmp.eq.s32.totalorder %s16, 1
    %p144 = por %p142, %p143
    %p145 = scmp.ne.s32.totalorder %s134, %s135
    %p146 = scmp.eq.s32.totalorder %s16, 0
    %p147 = por %p145, %p146
    %p148 = scmp.ne.s32.totalorder %s134, %s135
    %p149 = scmp.eq.s32.totalorder %s17, 1
    %p150 = por %p148, %p149
    %p152 = scmp.ne.s32.totalorder %s135, %s151
    %p153 = scmp.eq.s32.totalorder %s17, 0
    %p154 = por %p152, %p153
    %p155 = scmp.le.s32.totalorder 1, %s11
    %p156 = scmp.lt.s32.totalorder %s11, 3
    %p157 = pnand %p155, %p156
    %p158 = pneg %p157
    // Predicated region
    $region9: #{nonlocal_block_forward.1} parent=5 // pred_check
      _
    $region10: #{nonlocal_block_forward.1} parent=5 // pred_check_branch
      %160 = sbr.rel (%p157) target = $region12
    $region11: #{nonlocal_block_forward.1} parent=5 // pred_region
      %s161 = ssub.s32 %s11, 1
      // Predicated region
      $region13: #{nonlocal_block_forward.1} parent=11 // pred_check
        %p162 = pneg %p58
      $region14: #{nonlocal_block_forward.1} parent=11 // pred_check_branch
        %164 = sbr.rel (%p162) target = $region16
      $region15: #{nonlocal_block_forward.1} parent=11 // pred_region
        _
      $region16: #{nonlocal_block_forward.1} parent=11 // pred_fallthru
        _
      // Predicated region
      $region17: #{nonlocal_block_forward.1} parent=11 // pred_check
        %p165 = pneg %p79
      $region18: #{nonlocal_block_forward.1} parent=11 // pred_check_branch
        %167 = sbr.rel (%p165) target = $region20
      $region19: #{nonlocal_block_forward.1} parent=11 // pred_region
        _
      $region20: #{nonlocal_block_forward.1} parent=11 // pred_fallthru
        _
      // Predicated region
      $region21: #{nonlocal_block_forward.1} parent=11 // pred_check
        %p168 = pneg %p100
      $region22: #{nonlocal_block_forward.1} parent=11 // pred_check_branch
        %170 = sbr.rel (%p168) target = $region24
      $region23: #{nonlocal_block_forward.1} parent=11 // pred_region
        _
      $region24: #{nonlocal_block_forward.1} parent=11 // pred_fallthru
        _
      // Predicated region
      $region25: #{nonlocal_block_forward.1} parent=11 // pred_check
        %p171 = pneg %p121
      $region26: #{nonlocal_block_forward.1} parent=11 // pred_check_branch
        %173 = sbr.rel (%p171) target = $region28
      $region27: #{nonlocal_block_forward.1} parent=11 // pred_region
        _
      $region28: #{nonlocal_block_forward.1} parent=11 // pred_fallthru
        _
    $region12: #{nonlocal_block_forward.1} parent=5 // pred_fallthru
      _
    %p174 = scmp.lt.s32.totalorder %s11, 2
    // Predicated region
    $region29: #{nonlocal_block_forward.1} parent=5 // pred_check
      %p175 = pneg %p174
    $region30: #{nonlocal_block_forward.1} parent=5 // pred_check_branch
      %177 = sbr.rel (%p175) target = $region32
    $region31: #{nonlocal_block_forward.1} parent=5 // pred_region
      // Predicated region
      $region33: #{nonlocal_block_forward.1} parent=31 // pred_check
        %p178 = pneg %p31
      $region34: #{nonlocal_block_forward.1} parent=31 // pred_check_branch
        %180 = sbr.rel (%p178) target = $region36
      $region35: #{nonlocal_block_forward.1} parent=31 // pred_region
        %p181 = scmp.lt.s32.totalorder %s11, 1
        %s182 = scalar_select %p181, %s11, 1
        %s183 = smul.addr %s182, 2
        %s184 = smul.addr %s183, 8
        %s185 = scalar_lea.vmem %s0, %s184
      $region36: #{nonlocal_block_forward.1} parent=31 // pred_fallthru
        _
    $region32: #{nonlocal_block_forward.1} parent=5 // pred_fallthru
      _
    %p186 = scmp.le.s32.totalorder 1, %s11
    %p187 = scmp.lt.s32.totalorder %s11, 3
    %p188 = pnand %p186, %p187
    %p189 = pneg %p188
    // Predicated region
    $region37: #{nonlocal_block_forward.1} parent=5 // pred_check
      _
    $region38: #{nonlocal_block_forward.1} parent=5 // pred_check_branch
      %191 = sbr.rel (%p188) target = $region40
    $region39: #{nonlocal_block_forward.1} parent=5 // pred_region
      %s192 = ssub.s32 %s11, 1
      %p193 = scmp.lt.s32.totalorder %s16, 1
      %s194 = scalar_select %p193, %s16, 1
      %s195 = smul.addr %s194, 2
      %s196 = smul.addr %s195, 8
      %s197 = scalar_lea.vmem %s0, %s196
      %p198 = pneg %p37
      %p199 = pneg %p34
      %p200 = pneg %p58
      %p201 = pneg %p55
      %p202 = pneg %p79
      %p203 = pneg %p76
      %p204 = pneg %p100
      %p205 = pneg %p97
      %p206 = pneg %p121
      %p207 = pneg %p118
      %p208 = pneg %p147
      %p209 = pneg %p144
      %p210 = scmp.lt.s32.totalorder %s16, 1
      %s211 = scalar_select %p210, %s16, 1
      %s212 = smul.addr %s211, 2
      %s213 = smul.addr %s212, 8
      %s214 = scalar_lea.vmem %s5, %s213
      %p215 = scmp.lt.s32.totalorder %s16, 1
      %s216 = scalar_select %p215, %s16, 1
      %s217 = smul.addr %s216, 2
      %s218 = smul.addr %s217, 8
      %s219 = scalar_lea.vmem %s0, %s218
      %p220 = scmp.lt.s32.totalorder %s16, 1
      %s221 = scalar_select %p220, %s16, 1
      %s222 = smul.addr %s221, 2
      %s223 = smul.addr %s222, 8
      %s224 = scalar_lea.vmem %s5, %s223
      %v225 = vld [vmem:[%s219] sm:$0xff]
      %v226 = vld [vmem:[%s219 + $0x8] sm:$0xff]
      %v227 = vld [vmem:[%s1] sm:$0xff]
      %v228 = vld [vmem:[%s1 + $0x8] sm:$0xf]
      %v229 = vld [vmem:[%s2] sm:$0xff]
      %v230 = vld [vmem:[%s2 + $0x8] sm:$0xf]
      %232 = vset.pattern.permute.xlu0 0
      %233 = vperm.xlu0 %232, %v229
      %v234 = vpop.permute.xlu0 %233
      %237 = vset.pattern.permute.xlu0 0
      %238 = vperm.xlu0 %237, %v230
      %v239 = vpop.permute.xlu0 %238
      %vm241 = vcmask 64512
      %v243 = vsel %vm241, %v227, 0
      %v246 = vsel %vm241, %v228, 0
      %248 = vmatprep.subr.mxu0 %v226
      %249 = vmatpush1.msra.mxu0 %v225
      %250 = vmatprep.subr.mxu0 0.0
      %251 = vmatpush1.msra.mxu0 0.0
      %252 = vmatprep.subr.mxu0 0.0
      %253 = vmatpush1.msra.mxu0 0.0
      %254 = vmatprep.subr.mxu0 0.0
      %255 = vmatpush1.msra.mxu0 0.0
      %256 = vmatprep.subr.mxu0 0.0
      %257 = vmatpush1.msra.mxu0 0.0
      %258 = vmatprep.subr.mxu0 0.0
      %259 = vmatpush1.msra.mxu0 0.0
      %260 = vmatprep.subr.mxu0 0.0
      %261 = vmatpush1.msra.mxu0 0.0
      %262 = vmatprep.subr.mxu0 0.0
      %263 = vmatpush1.msra.mxu0 0.0
      %264 = vmatprep.subr.mxu0 0.0
      %265 = vmatpush1.msra.mxu0 0.0
      %266 = vmatprep.subr.mxu0 0.0
      %267 = vmatpush1.msra.mxu0 0.0
      %268 = vmatprep.subr.mxu0 0.0
      %269 = vmatpush1.msra.mxu0 0.0
      %270 = vmatprep.subr.mxu0 0.0
      %271 = vmatpush1.msra.mxu0 0.0
      %272 = vmatprep.subr.mxu0 0.0
      %273 = vmatpush1.msra.mxu0 0.0
      %274 = vmatprep.subr.mxu0 0.0
      %275 = vmatpush1.msra.mxu0 0.0
      %276 = vmatprep.subr.mxu0 0.0
      %277 = vmatpush1.msra.mxu0 0.0
      %278 = vmatprep.subr.mxu0 0.0
      %279 = vmatpush1.msra.mxu0 0.0
      %280 = vmatprep.subr.mxu0 0.0
      %281 = vmatpush1.msra.mxu0 0.0
      %282 = vmatprep.subr.mxu0 0.0
      %283 = vmatpush1.msra.mxu0 0.0
      %284 = vmatprep.subr.mxu0 0.0
      %285 = vmatpush1.msra.mxu0 0.0
      %286 = vmatprep.subr.mxu0 0.0
      %287 = vmatpush1.msra.mxu0 0.0
      %288 = vmatprep.subr.mxu0 0.0
      %289 = vmatpush1.msra.mxu0 0.0
      %290 = vmatprep.subr.mxu0 0.0
      %291 = vmatpush1.msra.mxu0 0.0
      %292 = vmatprep.subr.mxu0 0.0
      %293 = vmatpush1.msra.mxu0 0.0
      %294 = vmatprep.subr.mxu0 0.0
      %295 = vmatpush1.msra.mxu0 0.0
      %296 = vmatprep.subr.mxu0 0.0
      %297 = vmatpush1.msra.mxu0 0.0
      %298 = vmatprep.subr.mxu0 0.0
      %299 = vmatpush1.msra.mxu0 0.0
      %300 = vmatprep.subr.mxu0 0.0
      %301 = vmatpush1.msra.mxu0 0.0
      %302 = vmatprep.subr.mxu0 0.0
      %303 = vmatpush1.msra.mxu0 0.0
      %304 = vmatprep.subr.mxu0 0.0
      %305 = vmatpush1.msra.mxu0 0.0
      %306 = vmatprep.subr.mxu0 0.0
      %307 = vmatpush1.msra.mxu0 0.0
      %308 = vmatprep.subr.mxu0 0.0
      %309 = vmatpush1.msra.mxu0 0.0
      %310 = vmatprep.subr.mxu0 0.0
      %311 = vmatpush1.msra.mxu0 0.0
      %312 = vmatprep.mubr.f32.mxu0 0.0
      %313 = vmatmul.mubr.f32.gmra.mrb[0].mxu0 %v243
      %v314 = vpop.f32.mrb[0].mxu0
      %v315 = vadd.f32 %v234, %v314
      %v316 = vpop.f32.mrb[0].mxu0
      %v317 = vadd.f32 %v234, %v316
      %318 = vmatprep.mubr.f32.mxu0 0.0
      %319 = vmatmul.mubr.f32.gmra.mrb[0].mxu0 %v246
      %v320 = vpop.f32.mrb[0].mxu0
      %v321 = vadd.f32 %v239, %v320
      %v322 = vpop.f32.mrb[0].mxu0
      %v323 = vadd.f32 %v239, %v322
      %324 = vdwg.mxu0
      %326 = vrot.lane.b32.xlu0 %v315, 64
      %v327 = vpop.permute.xlu0 %326
      %v329 = vmax.f32 %v315, %v327
      %331 = vrot.lane.b32.xlu0 %v317, 64
      %v332 = vpop.permute.xlu0 %331
      %v334 = vmax.f32 %v317, %v332
      %v335 = vmax.f32 %v329, %v334
      %337 = vrot.lane.b32.xlu0 %v321, 64
      %v338 = vpop.permute.xlu0 %337
      %v340 = vmax.f32 %v321, %v338
      %342 = vrot.lane.b32.xlu0 %v323, 64
      %v343 = vpop.permute.xlu0 %342
      %v345 = vmax.f32 %v323, %v343
      %v346 = vmax.f32 %v340, %v345
      %v348 = vrot.slane %v335, 4
      %350 = vxpose.xlu0.b32.start [1/16] %v348, 128
      %351 = vxpose.xlu0.b32.cont [2/16] 0.0, 128
      %352 = vxpose.xlu0.b32.cont [3/16] 0.0, 128
      %353 = vxpose.xlu0.b32.cont [4/16] 0.0, 128
      %354 = vxpose.xlu0.b32.cont [5/16] 0.0, 128
      %355 = vxpose.xlu0.b32.cont [6/16] 0.0, 128
      %356 = vxpose.xlu0.b32.cont [7/16] 0.0, 128
      %357 = vxpose.xlu0.b32.cont [8/16] 0.0, 128
      %358 = vxpose.xlu0.b32.cont [9/16] 0.0, 128
      %359 = vxpose.xlu0.b32.cont [10/16] 0.0, 128
      %360 = vxpose.xlu0.b32.cont [11/16] 0.0, 128
      %361 = vxpose.xlu0.b32.cont [12/16] 0.0, 128
      %362 = vxpose.xlu0.b32.cont [13/16] 0.0, 128
      %363 = vxpose.xlu0.b32.cont [14/16] 0.0, 128
      %364 = vxpose.xlu0.b32.cont [15/16] 0.0, 128
      %365 = vxpose.xlu0.b32.end [16/16] 0.0, 128
      %v366 = vpop.trf.xlu0
      %v367 = vpop.trf.xlu0
      %v368 = vpop.trf.xlu0
      %v369 = vpop.trf.xlu0
      %v370 = vpop.trf.xlu0
      %v371 = vpop.trf.xlu0
      %v372 = vpop.trf.xlu0
      %v373 = vpop.trf.xlu0
      %v374 = vpop.trf.xlu0
      %v375 = vpop.trf.xlu0
      %v376 = vpop.trf.xlu0
      %v377 = vpop.trf.xlu0
      %v378 = vpop.trf.xlu0
      %v379 = vpop.trf.xlu0
      %v380 = vpop.trf.xlu0
      %v381 = vpop.trf.xlu0
      %vm382 = vcmask 31744
      %v384 = vsel %vm382, %v366, 0
      %v387 = vsel %vm382, %v367, 0
      %v390 = vsel %vm382, %v368, 0
      %v393 = vsel %vm382, %v369, 0
      %v396 = vsel %vm382, %v370, 0
      %v399 = vsel %vm382, %v371, 0
      %v402 = vsel %vm382, %v372, 0
      %v405 = vsel %vm382, %v373, 0
      %vm407 = vcmask 1043456
      %v408 = vsel %vm407, %v315, 0
      %v410 = vsel %vm407, %v317, 0
      %412 = vmatprep.subr.mxu0 %v410
      %413 = vmatpush1.msra.mxu0 %v408
      %414 = vmatprep.subr.mxu0 0.0
      %415 = vmatpush1.msra.mxu0 0.0
      %416 = vmatprep.subr.mxu0 0.0
      %417 = vmatpush1.msra.mxu0 0.0
      %418 = vmatprep.subr.mxu0 0.0
      %419 = vmatpush1.msra.mxu0 0.0
      %420 = vmatprep.subr.mxu0 0.0
      %421 = vmatpush1.msra.mxu0 0.0
      %422 = vmatprep.subr.mxu0 0.0
      %423 = vmatpush1.msra.mxu0 0.0
      %424 = vmatprep.subr.mxu0 0.0
      %425 = vmatpush1.msra.mxu0 0.0
      %426 = vmatprep.subr.mxu0 0.0
      %427 = vmatpush1.msra.mxu0 0.0
      %428 = vmatprep.subr.mxu0 0.0
      %429 = vmatpush1.msra.mxu0 0.0
      %430 = vmatprep.subr.mxu0 0.0
      %431 = vmatpush1.msra.mxu0 0.0
      %432 = vmatprep.subr.mxu0 0.0
      %433 = vmatpush1.msra.mxu0 0.0
      %434 = vmatprep.subr.mxu0 0.0
      %435 = vmatpush1.msra.mxu0 0.0
      %436 = vmatprep.subr.mxu0 0.0
      %437 = vmatpush1.msra.mxu0 0.0
      %438 = vmatprep.subr.mxu0 0.0
      %439 = vmatpush1.msra.mxu0 0.0
      %440 = vmatprep.subr.mxu0 0.0
      %441 = vmatpush1.msra.mxu0 0.0
      %442 = vmatprep.subr.mxu0 0.0
      %443 = vmatpush1.msra.mxu0 0.0
      %444 = vmatprep.subr.mxu0 0.0
      %445 = vmatpush1.msra.mxu0 0.0
      %446 = vmatprep.subr.mxu0 0.0
      %447 = vmatpush1.msra.mxu0 0.0
      %448 = vmatprep.subr.mxu0 0.0
      %449 = vmatpush1.msra.mxu0 0.0
      %450 = vmatprep.subr.mxu0 0.0
      %451 = vmatpush1.msra.mxu0 0.0
      %452 = vmatprep.subr.mxu0 0.0
      %453 = vmatpush1.msra.mxu0 0.0
      %454 = vmatprep.subr.mxu0 0.0
      %455 = vmatpush1.msra.mxu0 0.0
      %456 = vmatprep.subr.mxu0 0.0
      %457 = vmatpush1.msra.mxu0 0.0
      %458 = vmatprep.subr.mxu0 0.0
      %459 = vmatpush1.msra.mxu0 0.0
      %460 = vmatprep.subr.mxu0 0.0
      %461 = vmatpush1.msra.mxu0 0.0
      %462 = vmatprep.subr.mxu0 0.0
      %463 = vmatpush1.msra.mxu0 0.0
      %464 = vmatprep.subr.mxu0 0.0
      %465 = vmatpush1.msra.mxu0 0.0
      %466 = vmatprep.subr.mxu0 0.0
      %467 = vmatpush1.msra.mxu0 0.0
      %468 = vmatprep.subr.mxu0 0.0
      %469 = vmatpush1.msra.mxu0 0.0
      %470 = vmatprep.subr.mxu0 0.0
      %471 = vmatpush1.msra.mxu0 0.0
      %472 = vmatprep.subr.mxu0 0.0
      %473 = vmatpush1.msra.mxu0 0.0
      %474 = vmatprep.subr.mxu0 0.0
      %475 = vmatpush1.msra.mxu0 0.0
      %476 = vmatprep.mubr.f32.mxu0 0.0
      %477 = vmatmul.mubr.f32.gmra.mrb[0].mxu0 %v384
      %v478 = vpop.f32.mrb[0].mxu0
      %v479 = vadd.f32 0.0, %v478
      %v480 = vpop.f32.mrb[0].mxu0
      %v481 = vadd.f32 0.0, %v480
      %482 = vmatprep.mubr.f32.mxu0 0.0
      %483 = vmatmul.mubr.f32.gmra.mrb[0].mxu0 %v387
      %v484 = vpop.f32.mrb[0].mxu0
      %v485 = vadd.f32 0.0, %v484
      %v486 = vpop.f32.mrb[0].mxu0
      %v487 = vadd.f32 0.0, %v486
      %488 = vmatprep.mubr.f32.mxu0 0.0
      %489 = vmatmul.mubr.f32.gmra.mrb[0].mxu0 %v390
      %v490 = vpop.f32.mrb[0].mxu0
      %v491 = vadd.f32 0.0, %v490
      %v492 = vpop.f32.mrb[0].mxu0
      %v493 = vadd.f32 0.0, %v492
      %494 = vmatprep.mubr.f32.mxu0 0.0
      %495 = vmatmul.mubr.f32.gmra.mrb[0].mxu0 %v393
      %v496 = vpop.f32.mrb[0].mxu0
      %v497 = vadd.f32 0.0, %v496
      %v498 = vpop.f32.mrb[0].mxu0
      %v499 = vadd.f32 0.0, %v498
      %500 = vmatprep.mubr.f32.mxu0 0.0
      %501 = vmatmul.mubr.f32.gmra.mrb[0].mxu0 %v396
      %v502 = vpop.f32.mrb[0].mxu0
      %v503 = vadd.f32 0.0, %v502
      %v504 = vpop.f32.mrb[0].mxu0
      %v505 = vadd.f32 0.0, %v504
      %506 = vmatprep.mubr.f32.mxu0 0.0
      %507 = vmatmul.mubr.f32.gmra.mrb[0].mxu0 %v399
      %v508 = vpop.f32.mrb[0].mxu0
      %v509 = vadd.f32 0.0, %v508
      %v510 = vpop.f32.mrb[0].mxu0
      %v511 = vadd.f32 0.0, %v510
      %512 = vmatprep.mubr.f32.mxu0 0.0
      %513 = vmatmul.mubr.f32.gmra.mrb[0].mxu0 %v402
      %v514 = vpop.f32.mrb[0].mxu0
      %v515 = vadd.f32 0.0, %v514
      %v516 = vpop.f32.mrb[0].mxu0
      %v517 = vadd.f32 0.0, %v516
      %518 = vmatprep.mubr.f32.mxu0 0.0
      %519 = vmatmul.mubr.f32.gmra.mrb[0].mxu0 %v405
      %v520 = vpop.f32.mrb[0].mxu0
      %v521 = vadd.f32 0.0, %v520
      %v522 = vpop.f32.mrb[0].mxu0
      %v523 = vadd.f32 0.0, %v522
      %524 = vdwg.mxu0
      %v525 = vmax.f32 %v479, %v491
      %v526 = vmax.f32 %v485, %v497
      %v527 = vmax.f32 %v525, %v503
      %v528 = vmax.f32 %v526, %v509
      %v529 = vmax.f32 %v527, %v515
      %v530 = vmax.f32 %v528, %v521
      %v531 = vmax.f32 %v529, %v530
      %v532 = vrot.slane %v531, 4
      %v533 = vmax.f32 %v531, %v532
      %v534 = vrot.slane %v533, 2
      %v535 = vmax.f32 %v533, %v534
      %v536 = vrot.slane %v535, 1
      %v537 = vmax.f32 %v535, %v536
      %v538 = vmax.f32 %v481, %v493
      %v539 = vmax.f32 %v487, %v499
      %v540 = vmax.f32 %v538, %v505
      %v541 = vmax.f32 %v539, %v511
      %v542 = vmax.f32 %v540, %v517
      %v543 = vmax.f32 %v541, %v523
      %v544 = vmax.f32 %v542, %v543
      %v545 = vrot.slane %v544, 4
      %v546 = vmax.f32 %v544, %v545
      %v547 = vrot.slane %v546, 2
      %v548 = vmax.f32 %v546, %v547
      %v549 = vrot.slane %v548, 1
      %v550 = vmax.f32 %v548, %v549
      %v551 = vsub.f32 %v479, %v537
      %v552 = vsub.f32 %v481, %v550
      %v553 = vsub.f32 %v485, %v537
      %v554 = vsub.f32 %v487, %v550
      %v555 = vsub.f32 %v491, %v537
      %v556 = vsub.f32 %v493, %v550
      %v557 = vsub.f32 %v497, %v537
      %v558 = vsub.f32 %v499, %v550
      %v559 = vsub.f32 %v503, %v537
      %v560 = vsub.f32 %v505, %v550
      %v561 = vsub.f32 %v509, %v537
      %v562 = vsub.f32 %v511, %v550
      %v563 = vsub.f32 %v515, %v537
      %v564 = vsub.f32 %v517, %v550
      %v565 = vsub.f32 %v521, %v537
      %v566 = vsub.f32 %v523, %v550
      %v567 = vmul.f32 %v551, 1.442695
      %v568 = vpow.pop %v567
      %v569 = vmul.f32 %v552, 1.442695
      %v570 = vpow.pop %v569
      %v571 = vmul.f32 %v553, 1.442695
      %v572 = vpow.pop %v571
      %v573 = vmul.f32 %v554, 1.442695
      %v574 = vpow.pop %v573
      %v575 = vmul.f32 %v555, 1.442695
      %v576 = vpow.pop %v575
      %v577 = vmul.f32 %v556, 1.442695
      %v578 = vpow.pop %v577
      %v579 = vmul.f32 %v557, 1.442695
      %v580 = vpow.pop %v579
      %v581 = vmul.f32 %v558, 1.442695
      %v582 = vpow.pop %v581
      %v583 = vmul.f32 %v559, 1.442695
      %v584 = vpow.pop %v583
      %v585 = vmul.f32 %v560, 1.442695
      %v586 = vpow.pop %v585
      %v587 = vmul.f32 %v561, 1.442695
      %v588 = vpow.pop %v587
      %v589 = vmul.f32 %v562, 1.442695
      %v590 = vpow.pop %v589
      %v591 = vmul.f32 %v563, 1.442695
      %v592 = vpow.pop %v591
      %v593 = vmul.f32 %v564, 1.442695
      %v594 = vpow.pop %v593
      %v595 = vmul.f32 %v565, 1.442695
      %v596 = vpow.pop %v595
      %v597 = vmul.f32 %v566, 1.442695
      %v598 = vpow.pop %v597
      %v599 = vadd.f32 %v568, %v572
      %v600 = vadd.f32 %v599, %v576
      %v601 = vadd.f32 %v600, %v580
      %v602 = vadd.f32 %v601, %v584
      %v603 = vadd.f32 %v602, %v588
      %v604 = vadd.f32 %v603, %v592
      %v605 = vadd.f32 %v604, %v596
      %v606 = vrot.slane %v605, 4
      %v607 = vadd.f32 %v605, %v606
      %v608 = vrot.slane %v607, 2
      %v609 = vadd.f32 %v607, %v608
      %v610 = vrot.slane %v609, 1
      %v611 = vadd.f32 %v609, %v610
      %v612 = vadd.f32 %v570, %v574
      %v613 = vadd.f32 %v612, %v578
      %v614 = vadd.f32 %v613, %v582
      %v615 = vadd.f32 %v614, %v586
      %v616 = vadd.f32 %v615, %v590
      %v617 = vadd.f32 %v616, %v594
      %v618 = vadd.f32 %v617, %v598
      %v619 = vrot.slane %v618, 4
      %v620 = vadd.f32 %v618, %v619
      %v621 = vrot.slane %v620, 2
      %v622 = vadd.f32 %v620, %v621
      %v623 = vrot.slane %v622, 1
      %v624 = vadd.f32 %v622, %v623
      %vm625 = vcmask 523264
      %v627 = vsel %vm625, %v346, 0
      %629 = vmatprep.subr.mxu0 %v570
      %630 = vmatpush1.msra.mxu0 %v568
      %631 = vmatprep.subr.mxu0 %v574
      %632 = vmatpush1.msra.mxu0 %v572
      %633 = vmatprep.subr.mxu0 %v578
      %634 = vmatpush1.msra.mxu0 %v576
      %635 = vmatprep.subr.mxu0 %v582
      %636 = vmatpush1.msra.mxu0 %v580
      %637 = vmatprep.subr.mxu0 %v586
      %638 = vmatpush1.msra.mxu0 %v584
      %639 = vmatprep.subr.mxu0 %v590
      %640 = vmatpush1.msra.mxu0 %v588
      %641 = vmatprep.subr.mxu0 %v594
      %642 = vmatpush1.msra.mxu0 %v592
      %643 = vmatprep.subr.mxu0 %v598
      %644 = vmatpush1.msra.mxu0 %v596
      %645 = vmatprep.subr.mxu0 0.0
      %646 = vmatpush1.msra.mxu0 0.0
      %647 = vmatprep.subr.mxu0 0.0
      %648 = vmatpush1.msra.mxu0 0.0
      %649 = vmatprep.subr.mxu0 0.0
      %650 = vmatpush1.msra.mxu0 0.0
      %651 = vmatprep.subr.mxu0 0.0
      %652 = vmatpush1.msra.mxu0 0.0
      %653 = vmatprep.subr.mxu0 0.0
      %654 = vmatpush1.msra.mxu0 0.0
      %655 = vmatprep.subr.mxu0 0.0
      %656 = vmatpush1.msra.mxu0 0.0
      %657 = vmatprep.subr.mxu0 0.0
      %658 = vmatpush1.msra.mxu0 0.0
      %659 = vmatprep.subr.mxu0 0.0
      %660 = vmatpush1.msra.mxu0 0.0
      %661 = vmatprep.subr.mxu0 0.0
      %662 = vmatpush1.msra.mxu0 0.0
      %663 = vmatprep.subr.mxu0 0.0
      %664 = vmatpush1.msra.mxu0 0.0
      %665 = vmatprep.subr.mxu0 0.0
      %666 = vmatpush1.msra.mxu0 0.0
      %667 = vmatprep.subr.mxu0 0.0
      %668 = vmatpush1.msra.mxu0 0.0
      %669 = vmatprep.subr.mxu0 0.0
      %670 = vmatpush1.msra.mxu0 0.0
      %671 = vmatprep.subr.mxu0 0.0
      %672 = vmatpush1.msra.mxu0 0.0
      %673 = vmatprep.subr.mxu0 0.0
      %674 = vmatpush1.msra.mxu0 0.0
      %675 = vmatprep.subr.mxu0 0.0
      %676 = vmatpush1.msra.mxu0 0.0
      %677 = vmatprep.subr.mxu0 0.0
      %678 = vmatpush1.msra.mxu0 0.0
      %679 = vmatprep.subr.mxu0 0.0
      %680 = vmatpush1.msra.mxu0 0.0
      %681 = vmatprep.subr.mxu0 0.0
      %682 = vmatpush1.msra.mxu0 0.0
      %683 = vmatprep.subr.mxu0 0.0
      %684 = vmatpush1.msra.mxu0 0.0
      %685 = vmatprep.subr.mxu0 0.0
      %686 = vmatpush1.msra.mxu0 0.0
      %687 = vmatprep.subr.mxu0 0.0
      %688 = vmatpush1.msra.mxu0 0.0
      %689 = vmatprep.subr.mxu0 0.0
      %690 = vmatpush1.msra.mxu0 0.0
      %691 = vmatprep.subr.mxu0 0.0
      %692 = vmatpush1.msra.mxu0 0.0
      %693 = vmatprep.mubr.f32.mxu0 0.0
      %694 = vmatmul.mubr.f32.gmra.mrb[0].mxu0 %v627
      %v695 = vpop.f32.mrb[0].mxu0
      %v696 = vadd.f32 0.0, %v695
      %v697 = vpop.f32.mrb[0].mxu0
      %v698 = vadd.f32 0.0, %v697
      %699 = vdwg.mxu0
      %v700 = vrcp.pop %v611
      %v701 = vmul.f32 1.0, %v700
      %v702 = vrcp.pop %v624
      %v703 = vmul.f32 1.0, %v702
      %v704 = vmul.f32 %v696, %v701
      %v705 = vmul.f32 %v698, %v703
      %v706 = vld [vmem:[%s3] sm:$0xff]
      %v707 = vld [vmem:[%s4] sm:$0xff]
      %709 = vset.pattern.permute.xlu0 0
      %710 = vperm.xlu0 %709, %v707
      %v711 = vpop.permute.xlu0 %710
      %v714 = vsel %vm382, %v706, 0
      %v717 = vsel %vm407, %v704, 0
      %v720 = vsel %vm407, %v705, 0
      %722 = vmatprep.subr.mxu0 %v720
      %723 = vmatpush1.msra.mxu0 %v717
      %724 = vmatprep.subr.mxu0 0.0
      %725 = vmatpush1.msra.mxu0 0.0
      %726 = vmatprep.subr.mxu0 0.0
      %727 = vmatpush1.msra.mxu0 0.0
      %728 = vmatprep.subr.mxu0 0.0
      %729 = vmatpush1.msra.mxu0 0.0
      %730 = vmatprep.subr.mxu0 0.0
      %731 = vmatpush1.msra.mxu0 0.0
      %732 = vmatprep.subr.mxu0 0.0
      %733 = vmatpush1.msra.mxu0 0.0
      %734 = vmatprep.subr.mxu0 0.0
      %735 = vmatpush1.msra.mxu0 0.0
      %736 = vmatprep.subr.mxu0 0.0
      %737 = vmatpush1.msra.mxu0 0.0
      %738 = vmatprep.subr.mxu0 0.0
      %739 = vmatpush1.msra.mxu0 0.0
      %740 = vmatprep.subr.mxu0 0.0
      %741 = vmatpush1.msra.mxu0 0.0
      %742 = vmatprep.subr.mxu0 0.0
      %743 = vmatpush1.msra.mxu0 0.0
      %744 = vmatprep.subr.mxu0 0.0
      %745 = vmatpush1.msra.mxu0 0.0
      %746 = vmatprep.subr.mxu0 0.0
      %747 = vmatpush1.msra.mxu0 0.0
      %748 = vmatprep.subr.mxu0 0.0
      %749 = vmatpush1.msra.mxu0 0.0
      %750 = vmatprep.subr.mxu0 0.0
      %751 = vmatpush1.msra.mxu0 0.0
      %752 = vmatprep.subr.mxu0 0.0
      %753 = vmatpush1.msra.mxu0 0.0
      %754 = vmatprep.subr.mxu0 0.0
      %755 = vmatpush1.msra.mxu0 0.0
      %756 = vmatprep.subr.mxu0 0.0
      %757 = vmatpush1.msra.mxu0 0.0
      %758 = vmatprep.subr.mxu0 0.0
      %759 = vmatpush1.msra.mxu0 0.0
      %760 = vmatprep.subr.mxu0 0.0
      %761 = vmatpush1.msra.mxu0 0.0
      %762 = vmatprep.subr.mxu0 0.0
      %763 = vmatpush1.msra.mxu0 0.0
      %764 = vmatprep.subr.mxu0 0.0
      %765 = vmatpush1.msra.mxu0 0.0
      %766 = vmatprep.subr.mxu0 0.0
      %767 = vmatpush1.msra.mxu0 0.0
      %768 = vmatprep.subr.mxu0 0.0
      %769 = vmatpush1.msra.mxu0 0.0
      %770 = vmatprep.subr.mxu0 0.0
      %771 = vmatpush1.msra.mxu0 0.0
      %772 = vmatprep.subr.mxu0 0.0
      %773 = vmatpush1.msra.mxu0 0.0
      %774 = vmatprep.subr.mxu0 0.0
      %775 = vmatpush1.msra.mxu0 0.0
      %776 = vmatprep.subr.mxu0 0.0
      %777 = vmatpush1.msra.mxu0 0.0
      %778 = vmatprep.subr.mxu0 0.0
      %779 = vmatpush1.msra.mxu0 0.0
      %780 = vmatprep.subr.mxu0 0.0
      %781 = vmatpush1.msra.mxu0 0.0
      %782 = vmatprep.subr.mxu0 0.0
      %783 = vmatpush1.msra.mxu0 0.0
      %784 = vmatprep.subr.mxu0 0.0
      %785 = vmatpush1.msra.mxu0 0.0
      %786 = vmatprep.mubr.f32.mxu0 0.0
      %787 = vmatmul.mubr.f32.gmra.mrb[0].mxu0 %v714
      %v788 = vpop.f32.mrb[0].mxu0
      %v789 = vadd.f32 %v711, %v788
      %v790 = vpop.f32.mrb[0].mxu0
      %v791 = vadd.f32 %v711, %v790
      %792 = vdwg.mxu0
      %v793 = vadd.f32 %v789, %v225
      %v794 = vadd.f32 %v791, %v226
      %795 = vst [vmem:[%s224] sm:$0xff] %v793
      %796 = vst [vmem:[%s224 + $0x8] sm:$0xff] %v794
      %p797 = scmp.lt.s32.totalorder %s16, 1
      %s798 = scalar_select %p797, %s16, 1
      %s799 = smul.addr %s798, 2
      %s800 = smul.addr %s799, 8
      %s801 = scalar_lea.vmem %s5, %s800
      // Predicated region
      $region41: #{nonlocal_block_forward.1} parent=39 // pred_check
        %p802 = pneg %p144
      $region42: #{nonlocal_block_forward.1} parent=39 // pred_check_branch
        %804 = sbr.rel (%p802) target = $region44
      $region43: #{nonlocal_block_forward.1} parent=39 // pred_region
        _
      $region44: #{nonlocal_block_forward.1} parent=39 // pred_fallthru
        _
    $region40: #{nonlocal_block_forward.1} parent=5 // pred_fallthru
      _
    %p805 = scmp.le.s32.totalorder 2, %s11
    // Predicated region
    $region45: #{nonlocal_block_forward.1} parent=5 // pred_check
      %p806 = pneg %p805
    $region46: #{nonlocal_block_forward.1} parent=5 // pred_check_branch
      %808 = sbr.rel (%p806) target = $region48
    $region47: #{nonlocal_block_forward.1} parent=5 // pred_region
      %s809 = ssub.s32 %s11, 2
      // Predicated region
      $region49: #{nonlocal_block_forward.1} parent=47 // pred_check
        %p810 = pneg %p150
      $region50: #{nonlocal_block_forward.1} parent=47 // pred_check_branch
        %812 = sbr.rel (%p810) target = $region52
      $region51: #{nonlocal_block_forward.1} parent=47 // pred_region
        %p813 = scmp.lt.s32.totalorder %s17, 1
        %s814 = scalar_select %p813, %s17, 1
        %s815 = smul.addr %s814, 2
        %s816 = smul.addr %s815, 8
        %s817 = scalar_lea.vmem %s5, %s816
      $region52: #{nonlocal_block_forward.1} parent=47 // pred_fallthru
        _
    $region48: #{nonlocal_block_forward.1} parent=5 // pred_fallthru
      _
  $region6: #{nonlocal_block_forward.1} parent=0 // loop_footer
    %s15 = sadd.s32 1, %s11
  $region7: #{nonlocal_block_forward.1} parent=0 // loop_footer_branch
    %10 = sbr.rel target = $region3
  $region8: #{nonlocal_block_forward.1} parent=0 // loop_exit
    _

</llo_original>
